<compile_context>
chip_gen: v6e
topology: v6e:2x2x1
jax: 0.10.0
libtpu: 0.0.40
codegen_flags: <defaults>
</compile_context>

<pallas_src>
import functools

import jax
import jax.numpy as jnp
from jax.experimental import pallas as pl
from jax.experimental.pallas import tpu as pltpu


def _apply_act(y, pooler_act):
    if pooler_act == 'Tanh':
        return jnp.tanh(y)
    if pooler_act == 'ReLU':
        return jnp.maximum(y, 0.0)
    if pooler_act == 'GELU':
        # torch.nn.GELU default is the exact erf form, not the tanh approx.
        return jax.nn.gelu(y, approximate=False)
    if pooler_act == 'none':
        return y
    raise ValueError(pooler_act)


def _dense_kernel(x_ref, w_ref, b_ref, o_ref, *, pooler_act):
    """dense + activation on an already-pooled (tb, H) tile."""
    y = jnp.dot(x_ref[...], w_ref[...], preferred_element_type=jnp.float32)
    y = y + b_ref[...].astype(jnp.float32)
    o_ref[...] = _apply_act(y, pooler_act).astype(o_ref.dtype)


def _mean_dense_kernel(x_ref, w_ref, b_ref, o_ref, acc_ref, *,
                       inv_s, pooler_act):
    """Streaming mean over S (grid axis 1) + dense + activation."""
    s = pl.program_id(1)

    @pl.when(s == 0)
    def _():
        acc_ref[...] = jnp.zeros_like(acc_ref)

    # Running (batch, hidden) sum accumulated in f32 scratch.
    acc_ref[...] += jnp.sum(x_ref[...].astype(jnp.float32), axis=1)

    @pl.when(s == pl.num_programs(1) - 1)
    def _():
        pooled = (acc_ref[...] * inv_s).astype(x_ref.dtype)  # MXU-native dtype
        y = jnp.dot(pooled, w_ref[...], preferred_element_type=jnp.float32)
        y = y + b_ref[...].astype(jnp.float32)
        o_ref[...] = _apply_act(y, pooler_act).astype(o_ref.dtype)


def _pick_tile(dim, max_tile=256, align=8):
    """Largest tile <= max_tile that divides `dim` and is sublane-aligned."""
    if dim <= max_tile:
        return dim
    for t in range(max_tile, align - 1, -1):
        if dim % t == 0 and t % align == 0:
            return t
    return dim  # fall back to the full dim (always layout-legal)


def pooler_head(x, w, b, *, extract=True, avg=False, pooler_act='Tanh'):
    """Forward pass of PoolerHead.

    x: (B, S, H) if extract=True, else (B, H)
    w: (H, O)    dense weight (already transposed vs. torch's (O, H))
    b: (O,)      dense bias
    returns: (B, O) in x.dtype
    """
    H, O = w.shape

    # Pad O up to a multiple of 128 so output stores are lane-dense.
    o_pad = max(128, ((O + 127) // 128) * 128)
    if o_pad != O:
        w = jnp.pad(w, ((0, 0), (0, o_pad - O)))
        b = jnp.pad(b, (0, o_pad - O))
    b2 = b.reshape(1, o_pad)

    use_mean = bool(extract) and bool(avg)
    if extract and not avg:
        # CLS pooling: only the sequence-position-0 row feeds the kernel,
        # so the kernel reads B*H bytes of activations instead of B*S*H.
        x = x[:, 0, :]
    # extract=False: x is already (B, H) and used as-is.

    x_item = jnp.dtype(x.dtype).itemsize
    w_item = jnp.dtype(w.dtype).itemsize
    compiler_params = pltpu.CompilerParams(
        dimension_semantics=("parallel", "arbitrary") if use_mean
        else ("parallel",),
        vmem_limit_bytes=32 * 1024 * 1024,
    )

    if use_mean:
        B, S, _ = x.shape
        tb = _pick_tile(B)
        ts = _pick_tile(S)
        trans = B * o_pad if pooler_act in ('Tanh', 'GELU') else 0
        out = pl.pallas_call(
            functools.partial(_mean_dense_kernel, inv_s=1.0 / S,
                              pooler_act=pooler_act),
            out_shape=jax.ShapeDtypeStruct((B, o_pad), x.dtype),
            grid_spec=pltpu.PrefetchScalarGridSpec(
                num_scalar_prefetch=0,
                grid=(B // tb, S // ts),
                in_specs=[
                    pl.BlockSpec((tb, ts, H), lambda i, s: (i, s, 0)),
                    pl.BlockSpec((H, o_pad), lambda i, s: (0, 0)),
                    pl.BlockSpec((1, o_pad), lambda i, s: (0, 0)),
                ],
                out_specs=pl.BlockSpec((tb, o_pad), lambda i, s: (i, 0)),
                scratch_shapes=[pltpu.VMEM((tb, H), jnp.float32)],
            ),
            compiler_params=compiler_params,
            cost_estimate=pl.CostEstimate(
                flops=2 * B * H * o_pad + B * S * H,
                transcendentals=trans,
                bytes_accessed=(B * S * H * x_item + H * o_pad * w_item
                                + B * o_pad * x_item),
            ),
        )(x, w, b2)
    else:
        B, _ = x.shape
        tb = _pick_tile(B)
        trans = B * o_pad if pooler_act in ('Tanh', 'GELU') else 0
        out = pl.pallas_call(
            functools.partial(_dense_kernel, pooler_act=pooler_act),
            out_shape=jax.ShapeDtypeStruct((B, o_pad), x.dtype),
            grid_spec=pltpu.PrefetchScalarGridSpec(
                num_scalar_prefetch=0,
                grid=(B // tb,),
                in_specs=[
                    pl.BlockSpec((tb, H), lambda i: (i, 0)),
                    pl.BlockSpec((H, o_pad), lambda i: (0, 0)),
                    pl.BlockSpec((1, o_pad), lambda i: (0, 0)),
                ],
                out_specs=pl.BlockSpec((tb, o_pad), lambda i: (i, 0)),
            ),
            compiler_params=compiler_params,
            cost_estimate=pl.CostEstimate(
                flops=2 * B * H * o_pad,
                transcendentals=trans,
                bytes_accessed=(B * H * x_item + H * o_pad * w_item
                                + B * o_pad * x_item),
            ),
        )(x, w, b2)

    if o_pad != O:
        out = out[:, :O]
    return out


def _reference(x, w, b, *, extract=True, avg=False, pooler_act='Tanh'):
    if extract:
        x = jnp.mean(x, axis=1) if avg else x[:, 0]
    y = x @ w + b
    return _apply_act(y, pooler_act)


if __name__ == "__main__":
    key = jax.random.PRNGKey(0)
    kx, kw, kb = jax.random.split(key, 3)

    B, S, H, O = 2, 8, 32, 32  # hid_dim=32, output_dim defaults to hid_dim

    x = jax.random.normal(kx, (B, S, H), dtype=jnp.float32)
    # Deterministic synthetic Linear params (not a checkpoint load).
    bound = 1.0 / (H ** 0.5)
    w = jax.random.uniform(kw, (H, O), minval=-bound, maxval=bound,
                           dtype=jnp.float32)
    b = jax.random.uniform(kb, (O,), minval=-bound, maxval=bound,
                           dtype=jnp.float32)

    # Default forward: extract=True, avg=False, Tanh pooler (CLS path).
    out = jax.block_until_ready(
        pooler_head(x, w, b, extract=True, avg=False, pooler_act='Tanh'))
    ref = _reference(x, w, b, extract=True, avg=False, pooler_act='Tanh')
    assert out.shape == (B, O)
    assert jnp.allclose(out, ref, atol=1e-5, rtol=1e-5), "CLS path mismatch"

    # avg=True path (streaming mean over the sequence axis).
    out_avg = jax.block_until_ready(
        pooler_head(x, w, b, extract=True, avg=True, pooler_act='Tanh'))
    ref_avg = _reference(x, w, b, extract=True, avg=True, pooler_act='Tanh')
    assert jnp.allclose(out_avg, ref_avg, atol=1e-5, rtol=1e-5), "avg mismatch"

    # extract=False path (already-pooled input), no activation.
    x2d = x[:, 0, :]
    out_ne = jax.block_until_ready(
        pooler_head(x2d, w, b, extract=False, pooler_act='none'))
    ref_ne = _reference(x2d, w, b, extract=False, pooler_act='none')
    assert jnp.allclose(out_ne, ref_ne, atol=1e-5, rtol=1e-5), "no-extract mismatch"

    print("KERNEL_OK")
</pallas_src>

<mosaic_0001>
module attributes {stable_mosaic.version = 11 : i64} {
  func.func @_dense_kernel(%arg0: i32, %arg1: memref<2x32xf32, #tpu.memory_space<vmem>>, %arg2: memref<32x128xf32, #tpu.memory_space<vmem>>, %arg3: memref<1x128xf32, #tpu.memory_space<vmem>>, %arg4: memref<2x128xf32, #tpu.memory_space<vmem>>) attributes {dimension_semantics = [#tpu.dimension_semantics<parallel>], iteration_bounds = array<i64: 1>, scalar_prefetch = 0 : i64, scratch_operands = 0 : i64, tpu.core_type = #tpu.core_type<tc>, window_params = [{transform_indices = @transform_0, window_bounds = array<i64: 2, 32>}, {pipeline_mode = #tpu.pipeline_mode<synchronous>, transform_indices = @transform_1, window_bounds = array<i64: 32, 128>}, {pipeline_mode = #tpu.pipeline_mode<synchronous>, transform_indices = @transform_2, window_bounds = array<i64: 1, 128>}, {transform_indices = @transform_3, window_bounds = array<i64: 2, 128>}]} {
    %c0 = arith.constant 0 : index
    %c0_0 = arith.constant 0 : index
    %0 = vector.load %arg1[%c0, %c0_0] : memref<2x32xf32, #tpu.memory_space<vmem>>, vector<2x32xf32>
    %c0_1 = arith.constant 0 : index
    %c0_2 = arith.constant 0 : index
    %1 = vector.load %arg2[%c0_1, %c0_2] : memref<32x128xf32, #tpu.memory_space<vmem>>, vector<32x128xf32>
    %cst = arith.constant dense<0.000000e+00> : vector<2x128xf32>
    %2 = tpu.matmul %0, %1, %cst {dimension_numbers = #tpu.dot_dimension_numbers<[1], [0], [0], [1], [0, 0, 1, 1], [], []>} : vector<2x32xf32>, vector<32x128xf32>, vector<2x128xf32> -> vector<2x128xf32>
    %c0_3 = arith.constant 0 : index
    %c0_4 = arith.constant 0 : index
    %3 = vector.load %arg3[%c0_3, %c0_4] : memref<1x128xf32, #tpu.memory_space<vmem>>, vector<1x128xf32>
    %4 = vector.broadcast %3 : vector<1x128xf32> to vector<2x128xf32>
    %5 = arith.addf %2, %4 : vector<2x128xf32>
    %6 = math.tanh %5 : vector<2x128xf32>
    %c0_5 = arith.constant 0 : index
    %c0_6 = arith.constant 0 : index
    %7 = vector.load %arg4[%c0_5, %c0_6] : memref<2x128xf32, #tpu.memory_space<vmem>>, vector<2x128xf32>
    tpu.vector_store %arg4[%c0_5, %c0_6], %6 {strides = array<i32>} : memref<2x128xf32, #tpu.memory_space<vmem>>, vector<2x128xf32>,
    return
  }
  func.func @transform_0(%arg0: i32) -> (i32, i32) {
    %c0_i32 = arith.constant 0 : i32
    %c0_i32_0 = arith.constant 0 : i32
    return %arg0, %c0_i32 : i32, i32
  }
  func.func @transform_1(%arg0: i32) -> (i32, i32) {
    %c0_i32 = arith.constant 0 : i32
    %c0_i32_0 = arith.constant 0 : i32
    %c0_i32_1 = arith.constant 0 : i32
    return %c0_i32, %c0_i32_0 : i32, i32
  }
  func.func @transform_2(%arg0: i32) -> (i32, i32) {
    %c0_i32 = arith.constant 0 : i32
    %c0_i32_0 = arith.constant 0 : i32
    %c0_i32_1 = arith.constant 0 : i32
    return %c0_i32, %c0_i32_0 : i32, i32
  }
  func.func @transform_3(%arg0: i32) -> (i32, i32) {
    %c0_i32 = arith.constant 0 : i32
    %c0_i32_0 = arith.constant 0 : i32
    return %arg0, %c0_i32 : i32, i32
  }
}

</mosaic_0001>

<llo_original>
// kernel: tpu_custom_call.1
$region0: #{tpu_custom_call.1}
  #allocation0 [shape = 'u32[]', space=smem, size = 0x4, offset = 0x4, fixed_abs, tag = 'smem constant byte address 0x4 - core index']
  #allocation1 [shape = 'u32[144,128]{1,0:T(1,128)}', space=vmem, size = 0x12000, scoped, tag = 'internal scratch']
  %s0 = inlined_call_operand.hbm [shape: f32[2,32], index: 0, kind: input, shape index: {}]
  %s1 = inlined_call_operand.hbm [shape: f32[32,128], index: 1, kind: input, shape index: {}]
  %s2 = inlined_call_operand.vmem [shape: f32[1,128], index: 2, kind: input, shape index: {}]
  %s3 = inlined_call_operand.hbm [shape: f32[2,128], index: 3, kind: output, shape index: {}]
  %s4 = sld [smem:[#allocation0]]
  $region30: #{tpu_custom_call.1} parent=0
    _
  %s6 = ssub.s32 1, %s4
  %s7 = scalar_select 0, %s6, %s4
  $region1: #{tpu_custom_call.1} parent=0
    #allocation2 [shape = 'u8[1024]{0}', space=vmem, size = 0x400, scoped, tag = 'input window, operand 0, single buffered']
    #allocation3 [shape = 's32[1]{0}', space=sflag, size = 0x4, scoped, tag = 'scoped memory for tpu_custom_call.1']
    #allocation4 [shape = 's32[1]{0}', space=sflag, size = 0x4, scoped, tag = 'scoped memory for tpu_custom_call.1']
    #allocation5 [shape = 'u8[16384]{0}', space=vmem, size = 0x4000, scoped, tag = 'input window, operand 1, single buffered']
    #allocation6 [shape = 's32[1]{0}', space=sflag, size = 0x4, scoped, tag = 'scoped memory for tpu_custom_call.1']
    #allocation7 [shape = 'u8[1024]{0}', space=vmem, size = 0x400, scoped, tag = 'output window, operand 0, single buffered']
    %8 = vsyncpa [#allocation3], 0
    %9 = vsyncpa [#allocation6], 0
    %10 = vsyncpa [#allocation4], 0
    // Predicated region
    $region2: #{tpu_custom_call.1} parent=1 // pred_check
      _
    $region3: #{tpu_custom_call.1} parent=1 // pred_check_branch
      %12 = sbr.rel (0) target = $region5
    $region4: #{tpu_custom_call.1} parent=1 // pred_region
      %s14 = ssub.s32 32, 32
      %15 = vsyncadd [#allocation3], %s14
      %s17 = sshll.u32 [#allocation2], 4
      %s18 = int_to_ptr.vmem [resolvable:$true] %s17
      %20 = dma.hbm_to_vmem [thread:$0]  %s0, 32, %s18, [#allocation3]
    $region5: #{tpu_custom_call.1} parent=1 // pred_fallthru
      _
    // Predicated region
    $region6: #{tpu_custom_call.1} parent=1 // pred_check
      _
    $region7: #{tpu_custom_call.1} parent=1 // pred_check_branch
      %22 = sbr.rel (0) target = $region9
    $region8: #{tpu_custom_call.1} parent=1 // pred_region
      %s24 = ssub.s32 512, 512
      %25 = vsyncadd [#allocation6], %s24
      %s26 = sshll.u32 [#allocation5], 4
      %s27 = int_to_ptr.vmem [resolvable:$true] %s26
      %32 = dma.hbm_to_vmem [thread:$0]  %s1, 512, %s27, [#allocation6], 128, 128, 8
    $region9: #{tpu_custom_call.1} parent=1 // pred_fallthru
      _
    // Predicated region
    $region10: #{tpu_custom_call.1} parent=1 // pred_check
      _
    $region11: #{tpu_custom_call.1} parent=1 // pred_check_branch
      %34 = sbr.rel (0) target = $region13
    $region12: #{tpu_custom_call.1} parent=1 // pred_region
      _
    $region13: #{tpu_custom_call.1} parent=1 // pred_fallthru
      _
    // Predicated region
    $region14: #{tpu_custom_call.1} parent=1 // pred_check
      _
    $region15: #{tpu_custom_call.1} parent=1 // pred_check_branch
      %36 = sbr.rel (0) target = $region17
    $region16: #{tpu_custom_call.1} parent=1 // pred_region
      %37 = dma.done [#allocation3], 32
    $region17: #{tpu_custom_call.1} parent=1 // pred_fallthru
      _
    // Predicated region
    $region18: #{tpu_custom_call.1} parent=1 // pred_check
      _
    $region19: #{tpu_custom_call.1} parent=1 // pred_check_branch
      %39 = sbr.rel (0) target = $region21
    $region20: #{tpu_custom_call.1} parent=1 // pred_region
      %40 = dma.done [#allocation6], 512
    $region21: #{tpu_custom_call.1} parent=1 // pred_fallthru
      _
    %v41 = vld [vmem:[#allocation2] sm:$0x3]
    %v42 = vld [vmem:[#allocation5] sm:$0xff]
    %v43 = vld [vmem:[#allocation5 + $0x8] sm:$0xff]
    %v44 = vld [vmem:[#allocation5 + $0x10] sm:$0xff]
    %v45 = vld [vmem:[#allocation5 + $0x18] sm:$0xff]
    %v46 = vld [vmem:[%s2] sm:$0x1]
    %v48 = vlaneseq
    %v49 = vshrl.u32 %v48, 7
    %v50 = vsub.s32 0, %v49
    %v51 = vrot.slane %v46, %v50
    %vm53 = vcmask 261120
    %v55 = vsel %vm53, %v41, 0
    %57 = vmatprep.subr.mxu0 0.0
    %58 = vmatpush1.msra.mxu0 0.0
    %59 = vmatprep.subr.mxu0 0.0
    %60 = vmatpush1.msra.mxu0 0.0
    %61 = vmatprep.subr.mxu0 0.0
    %62 = vmatpush1.msra.mxu0 0.0
    %63 = vmatprep.subr.mxu0 0.0
    %64 = vmatpush1.msra.mxu0 0.0
    %65 = vmatprep.subr.mxu0 0.0
    %66 = vmatpush1.msra.mxu0 0.0
    %67 = vmatprep.subr.mxu0 0.0
    %68 = vmatpush1.msra.mxu0 0.0
    %69 = vmatprep.subr.mxu0 0.0
    %70 = vmatpush1.msra.mxu0 0.0
    %71 = vmatprep.subr.mxu0 0.0
    %72 = vmatpush1.msra.mxu0 0.0
    %73 = vmatprep.subr.mxu0 0.0
    %74 = vmatpush1.msra.mxu0 0.0
    %75 = vmatprep.subr.mxu0 0.0
    %76 = vmatpush1.msra.mxu0 0.0
    %77 = vmatprep.subr.mxu0 0.0
    %78 = vmatpush1.msra.mxu0 0.0
    %79 = vmatprep.subr.mxu0 0.0
    %80 = vmatpush1.msra.mxu0 0.0
    %81 = vmatprep.subr.mxu0 0.0
    %82 = vmatpush1.msra.mxu0 %v45
    %83 = vmatprep.subr.mxu0 0.0
    %84 = vmatpush1.msra.mxu0 %v44
    %85 = vmatprep.subr.mxu0 0.0
    %86 = vmatpush1.msra.mxu0 %v43
    %87 = vmatprep.subr.mxu0 0.0
    %88 = vmatpush1.msra.mxu0 %v42
    %89 = vmatprep.subr.mxu0 0.0
    %90 = vmatpush2.msra.mxu0 0.0
    %91 = vmatprep.subr.mxu0 0.0
    %92 = vmatpush2.msra.mxu0 0.0
    %93 = vmatprep.subr.mxu0 0.0
    %94 = vmatpush2.msra.mxu0 0.0
    %95 = vmatprep.subr.mxu0 0.0
    %96 = vmatpush2.msra.mxu0 0.0
    %97 = vmatprep.subr.mxu0 0.0
    %98 = vmatpush2.msra.mxu0 0.0
    %99 = vmatprep.subr.mxu0 0.0
    %100 = vmatpush2.msra.mxu0 0.0
    %101 = vmatprep.subr.mxu0 0.0
    %102 = vmatpush2.msra.mxu0 0.0
    %103 = vmatprep.subr.mxu0 0.0
    %104 = vmatpush2.msra.mxu0 0.0
    %105 = vmatprep.subr.mxu0 0.0
    %106 = vmatpush2.msra.mxu0 0.0
    %107 = vmatprep.subr.mxu0 0.0
    %108 = vmatpush2.msra.mxu0 0.0
    %109 = vmatprep.subr.mxu0 0.0
    %110 = vmatpush2.msra.mxu0 0.0
    %111 = vmatprep.subr.mxu0 0.0
    %112 = vmatpush2.msra.mxu0 0.0
    %113 = vmatprep.subr.mxu0 0.0
    %114 = vmatpush2.msra.mxu0 0.0
    %115 = vmatprep.subr.mxu0 0.0
    %116 = vmatpush2.msra.mxu0 0.0
    %117 = vmatprep.subr.mxu0 0.0
    %118 = vmatpush2.msra.mxu0 0.0
    %119 = vmatprep.subr.mxu0 0.0
    %120 = vmatpush2.msra.mxu0 0.0
    %121 = vmatprep.mubr.f32.mxu0 0.0
    %122 = vmatmul.mubr.f32.gmra.mxu0 %v55
    %v123 = vpop.f32.mrf.mxu0
    %v124 = vadd.f32 %v51, %v123
    %v125 = vpop.f32.mrf.mxu0
    %126 = vdwg.mxu0
    %v127 = vtanh.pop %v124
    %128 = vst [vmem:[#allocation7] sm:$0x3] %v127
    // Predicated region
    $region22: #{tpu_custom_call.1} parent=1 // pred_check
      _
    $region23: #{tpu_custom_call.1} parent=1 // pred_check_branch
      %130 = sbr.rel (0) target = $region25
    $region24: #{tpu_custom_call.1} parent=1 // pred_region
      %s132 = ssub.s32 32, 32
      %133 = vsyncadd [#allocation4], %s132
      %s135 = sshll.u32 [#allocation7], 4
      %s136 = int_to_ptr.vmem [resolvable:$true] %s135
      %138 = dma.vmem_to_hbm [thread:$0]  %s136, 32, %s3, [#allocation4]
    $region25: #{tpu_custom_call.1} parent=1 // pred_fallthru
      _
    // Predicated region
    $region26: #{tpu_custom_call.1} parent=1 // pred_check
      _
    $region27: #{tpu_custom_call.1} parent=1 // pred_check_branch
      %140 = sbr.rel (0) target = $region29
    $region28: #{tpu_custom_call.1} parent=1 // pred_region
      %141 = dma.done [#allocation4], 32
    $region29: #{tpu_custom_call.1} parent=1 // pred_fallthru
      _
    %142 = vsyncpa [#allocation3], 1
    %143 = vsyncpa [#allocation6], 1
    %144 = vsyncpa [#allocation4], 1

</llo_original>
